<compile_context>
chip_gen: v7x
topology: tpu7x:2x2x1
jax: 0.10.0
libtpu: 0.0.40
codegen_flags: <defaults>
</compile_context>

<pallas_src>
import functools

import jax
import jax.numpy as jnp
from jax.experimental import pallas as pl
from jax.experimental.pallas import tpu as pltpu


def _disent_loss_kernel(c_ref, out_ref, sum_acc, gram_acc, *,
                        n_orig, d_orig, tile_n, ragged):
    step = pl.program_id(0)

    @pl.when(step == 0)
    def _init():
        sum_acc[...] = jnp.zeros_like(sum_acc)
        gram_acc[...] = jnp.zeros_like(gram_acc)

    # Per-tile accumulation: one column-sum and one MXU matmul touch the (tile_n, D)
    # data.  Only the (statically known) ragged last tile needs row masking; the select
    # turns out-of-bounds garbage rows into exact zeros so they contribute nothing.
    c = c_ref[...]                                                  # (tile_n, D) f32
    if ragged:
        rows_left = n_orig - step * tile_n
        row_ids = jax.lax.broadcasted_iota(jnp.int32, (tile_n, d_orig), 0)
        c = jnp.where(row_ids < rows_left, c, jnp.float32(0.0))

    sum_acc[...] += jnp.sum(c, axis=0, keepdims=True)               # (1, D)
    gram_acc[...] += jax.lax.dot_general(                           # (D, D) = c^T c
        c, c,
        dimension_numbers=(((0,), (0,)), ((), ())),
        preferred_element_type=jnp.float32,
    )

    @pl.when(step == pl.num_programs(0) - 1)
    def _finalize():
        s = sum_acc[...]                                            # (1, D)
        g = gram_acc[...]                                           # (D, D)
        inv_n = jnp.float32(1.0 / n_orig)

        # Centered Gram: G_c[i,j] = sum_n (c_ni - mu_i)(c_nj - mu_j) = G - S S^T / N.
        # Outer product via a K=1 dot_general (no in-kernel transpose needed).
        s_outer = jax.lax.dot_general(
            s, s,
            dimension_numbers=(((0,), (0,)), ((), ())),
            preferred_element_type=jnp.float32,
        )                                                           # (D, D): S_i * S_j
        g_c = g - s_outer * inv_n

        rows = jax.lax.broadcasted_iota(jnp.int32, (d_orig, d_orig), 0)
        cols = jax.lax.broadcasted_iota(jnp.int32, (d_orig, d_orig), 1)
        eye_mask = rows == cols

        # Unbiased variance per column (torch.std default ddof=1) from diag(G_c).
        diag_gc = jnp.sum(jnp.where(eye_mask, g_c, jnp.float32(0.0)),
                          axis=0, keepdims=True)                    # (1, D)
        var = diag_gc / jnp.float32(n_orig - 1)
        inv_std = jax.lax.rsqrt(var)                                # (1, D), EUP

        # corr[i,j] = G_c[i,j] * inv_std_i * inv_std_j / N == (c_stded^T c_stded / N)[i,j]
        inv_outer = jax.lax.dot_general(
            inv_std, inv_std,
            dimension_numbers=(((0,), (0,)), ((), ())),
            preferred_element_type=jnp.float32,
        )                                                           # (D, D)
        corr = g_c * inv_outer * inv_n

        target = eye_mask.astype(jnp.float32)                       # eye(D), never DMA'd
        out_ref[...] = jnp.reshape(jnp.sum(jnp.abs(target - corr)), (1, 1))


def disentanglement_loss(codes, attributes=None, loss_type='Correlation',
                         corr_celeba=None, max_tile_rows=None):
    """Pallas implementation of DisentanglementLoss.forward (f32)."""
    codes = jnp.asarray(codes, jnp.float32)
    n, d = codes.shape

    # Per exact PyTorch semantics both loss types compare against eye(D); the identity
    # is generated in-kernel, so nothing reference-related is passed in.
    del attributes, corr_celeba, loss_type

    # ---- batch tiling (no host-side padding / copies) ------------------------------
    # ~4 MiB per pipeline buffer (double-buffered) keeps us well under the scoped-VMEM
    # limit on every generation including v7x.
    max_rows = max(8, ((4 * 1024 * 1024) // (d * 4)) // 8 * 8)
    if max_tile_rows is not None:
        max_rows = max(8, (max_tile_rows // 8) * 8)

    if n <= max_rows:
        tile_n = n                      # full-extent block: legal for any n, no masking
        num_tiles = 1
        ragged = False
    else:
        tile_n = max_rows               # multiple of 8
        num_tiles = pl.cdiv(n, tile_n)
        ragged = (n % tile_n) != 0      # last tile's extra rows masked in-kernel

    kernel = functools.partial(_disent_loss_kernel, n_orig=n, d_orig=d,
                               tile_n=tile_n, ragged=ragged)

    cost = pl.CostEstimate(
        flops=2 * n * d * d + 6 * d * d,
        transcendentals=d,
        bytes_accessed=n * d * 4 + 4,
    )

    out = pl.pallas_call(
        kernel,
        out_shape=jax.ShapeDtypeStruct((1, 1), jnp.float32),
        grid_spec=pltpu.PrefetchScalarGridSpec(
            num_scalar_prefetch=0,
            grid=(num_tiles,),
            in_specs=[pl.BlockSpec((tile_n, d), lambda i: (i, 0))],
            out_specs=pl.BlockSpec((1, 1), lambda i: (0, 0)),
            scratch_shapes=[
                pltpu.VMEM((1, d), jnp.float32),        # running column sum S
                pltpu.VMEM((d, d), jnp.float32),        # running Gram  G = c^T c
            ],
        ),
        compiler_params=pltpu.CompilerParams(
            dimension_semantics=("arbitrary",),         # batch axis is a reduction
            vmem_limit_bytes=32 * 1024 * 1024,
        ),
        cost_estimate=cost,
    )(codes)
    return out[0, 0]


def _reference_jax(codes):
    """Pure-JAX reference for correctness checking."""
    c = jnp.asarray(codes, jnp.float32)
    n, d = c.shape
    mean = jnp.mean(c, axis=0)
    std = jnp.std(c, axis=0, ddof=1)          # torch.std default: unbiased
    c_stded = (c - mean) / std
    corr = c_stded.T @ c_stded / n
    return jnp.sum(jnp.abs(jnp.eye(d, dtype=jnp.float32) - corr))


if __name__ == "__main__":
    key = jax.random.PRNGKey(0)
    N, D = 8, 32                               # batch of 8 codes, 32-dim latent
    codes = jax.random.normal(key, (N, D), dtype=jnp.float32)

    # Deterministic synthetic stand-in for the CelebA autocorrelation buffer
    # (never used by forward, see header comment).
    k2 = jax.random.PRNGKey(1)
    a = jax.random.normal(k2, (64, D), dtype=jnp.float32)
    a = (a - a.mean(0)) / a.std(0)
    corr_celeba = a.T @ a / a.shape[0]
    attributes = jnp.arange(4)

    loss = disentanglement_loss(codes, attributes=attributes,
                                loss_type='Correlation',
                                corr_celeba=corr_celeba)
    loss = jax.block_until_ready(loss)

    ref = jax.block_until_ready(_reference_jax(codes))
    assert jnp.allclose(loss, ref, rtol=1e-4, atol=1e-4), (loss, ref)

    # Penalised path (identical value per exact PyTorch semantics).
    loss_p = jax.block_until_ready(
        disentanglement_loss(codes, attributes=attributes,
                             loss_type='CorrelationPenalised',
                             corr_celeba=corr_celeba))
    assert jnp.allclose(loss_p, ref, rtol=1e-4, atol=1e-4)

    # Larger, non-aligned shape: default path (single full-extent tile, no padding).
    N2, D2 = 1000, 48
    codes2 = jax.random.normal(jax.random.PRNGKey(2), (N2, D2), dtype=jnp.float32) * 3.0 + 0.5
    ref2 = jax.block_until_ready(_reference_jax(codes2))
    loss2 = jax.block_until_ready(disentanglement_loss(codes2))
    assert jnp.allclose(loss2, ref2, rtol=1e-3, atol=1e-3), (loss2, ref2)

    # Force multi-tile + ragged-last-tile path to exercise in-kernel row masking.
    loss3 = jax.block_until_ready(disentanglement_loss(codes2, max_tile_rows=256))
    assert jnp.allclose(loss3, ref2, rtol=1e-3, atol=1e-3), (loss3, ref2)

    print("KERNEL_OK")
</pallas_src>

<mosaic_0001>
module attributes {stable_mosaic.version = 11 : i64} {
  func.func @_disent_loss_kernel(%arg0: i32, %arg1: memref<8x32xf32, #tpu.memory_space<vmem>>, %arg2: memref<1x1xf32, #tpu.memory_space<vmem>>, %arg3: memref<1x32xf32, #tpu.memory_space<vmem>>, %arg4: memref<32x32xf32, #tpu.memory_space<vmem>>) attributes {dimension_semantics = [#tpu.dimension_semantics<arbitrary>], iteration_bounds = array<i64: 1>, scalar_prefetch = 0 : i64, scratch_operands = 2 : i64, tpu.core_type = #tpu.core_type<tc>, window_params = [{transform_indices = @transform_0, window_bounds = array<i64: 8, 32>}, {pipeline_mode = #tpu.pipeline_mode<synchronous>, transform_indices = @transform_1, window_bounds = array<i64: 1, 1>}]} {
    %c0_i32 = arith.constant 0 : i32
    %0 = arith.cmpi eq, %arg0, %c0_i32 : i32
    %1 = arith.extui %0 : i1 to i32
    %c0_i32_0 = arith.constant 0 : i32
    %2 = arith.cmpi ne, %1, %c0_i32_0 : i32
    scf.if %2 {
      %cst_13 = arith.constant 0.000000e+00 : f32
      %16 = vector.broadcast %cst_13 : f32 to vector<1x32xf32>
      %c0_14 = arith.constant 0 : index
      %c0_15 = arith.constant 0 : index
      %17 = vector.load %arg3[%c0_14, %c0_15] : memref<1x32xf32, #tpu.memory_space<vmem>>, vector<1x32xf32>
      tpu.vector_store %arg3[%c0_14, %c0_15], %16 {strides = array<i32>} : memref<1x32xf32, #tpu.memory_space<vmem>>, vector<1x32xf32>,
      %cst_16 = arith.constant 0.000000e+00 : f32
      %18 = vector.broadcast %cst_16 : f32 to vector<32x32xf32>
      %c0_17 = arith.constant 0 : index
      %c0_18 = arith.constant 0 : index
      %19 = vector.load %arg4[%c0_17, %c0_18] : memref<32x32xf32, #tpu.memory_space<vmem>>, vector<32x32xf32>
      tpu.vector_store %arg4[%c0_17, %c0_18], %18 {strides = array<i32>} : memref<32x32xf32, #tpu.memory_space<vmem>>, vector<32x32xf32>,
    } else {
    }
    %c0 = arith.constant 0 : index
    %c0_1 = arith.constant 0 : index
    %3 = vector.load %arg1[%c0, %c0_1] : memref<8x32xf32, #tpu.memory_space<vmem>>, vector<8x32xf32>
    %c0_2 = arith.constant 0 : index
    %c0_3 = arith.constant 0 : index
    %4 = vector.load %arg3[%c0_2, %c0_3] : memref<1x32xf32, #tpu.memory_space<vmem>>, vector<1x32xf32>
    %cst = arith.constant dense<0.000000e+00> : vector<32xf32>
    %5 = vector.multi_reduction <add>, %3, %cst [0] : vector<8x32xf32> to vector<32xf32>
    %6 = vector.shape_cast %5 : vector<32xf32> to vector<1x32xf32>
    %7 = arith.addf %4, %6 : vector<1x32xf32>
    %c0_4 = arith.constant 0 : index
    %c0_5 = arith.constant 0 : index
    %8 = vector.load %arg3[%c0_4, %c0_5] : memref<1x32xf32, #tpu.memory_space<vmem>>, vector<1x32xf32>
    tpu.vector_store %arg3[%c0_4, %c0_5], %7 {strides = array<i32>} : memref<1x32xf32, #tpu.memory_space<vmem>>, vector<1x32xf32>,
    %c0_6 = arith.constant 0 : index
    %c0_7 = arith.constant 0 : index
    %9 = vector.load %arg4[%c0_6, %c0_7] : memref<32x32xf32, #tpu.memory_space<vmem>>, vector<32x32xf32>
    %cst_8 = arith.constant dense<0.000000e+00> : vector<32x32xf32>
    %10 = tpu.matmul %3, %3, %cst_8 {dimension_numbers = #tpu.dot_dimension_numbers<[0], [0], [1], [1], [0, 1, 1, 1], [], []>} : vector<8x32xf32>, vector<8x32xf32>, vector<32x32xf32> -> vector<32x32xf32>
    %11 = arith.addf %9, %10 : vector<32x32xf32>
    %c0_9 = arith.constant 0 : index
    %c0_10 = arith.constant 0 : index
    %12 = vector.load %arg4[%c0_9, %c0_10] : memref<32x32xf32, #tpu.memory_space<vmem>>, vector<32x32xf32>
    tpu.vector_store %arg4[%c0_9, %c0_10], %11 {strides = array<i32>} : memref<32x32xf32, #tpu.memory_space<vmem>>, vector<32x32xf32>,
    %c0_i32_11 = arith.constant 0 : i32
    %13 = arith.cmpi eq, %arg0, %c0_i32_11 : i32
    %14 = arith.extui %13 : i1 to i32
    %c0_i32_12 = arith.constant 0 : i32
    %15 = arith.cmpi ne, %14, %c0_i32_12 : i32
    scf.if %15 {
      %c0_13 = arith.constant 0 : index
      %c0_14 = arith.constant 0 : index
      %16 = vector.load %arg3[%c0_13, %c0_14] : memref<1x32xf32, #tpu.memory_space<vmem>>, vector<1x32xf32>
      %c0_15 = arith.constant 0 : index
      %c0_16 = arith.constant 0 : index
      %17 = vector.load %arg4[%c0_15, %c0_16] : memref<32x32xf32, #tpu.memory_space<vmem>>, vector<32x32xf32>
      %cst_17 = arith.constant dense<0.000000e+00> : vector<32x32xf32>
      %18 = tpu.matmul %16, %16, %cst_17 {dimension_numbers = #tpu.dot_dimension_numbers<[0], [0], [1], [1], [0, 1, 1, 1], [], []>} : vector<1x32xf32>, vector<1x32xf32>, vector<32x32xf32> -> vector<32x32xf32>
      %cst_18 = arith.constant 1.250000e-01 : f32
      %19 = vector.broadcast %cst_18 : f32 to vector<32x32xf32>
      %20 = arith.mulf %18, %19 : vector<32x32xf32>
      %21 = arith.subf %17, %20 : vector<32x32xf32>
      %22 = tpu.iota {dimensions = array<i32: 0>} : vector<32x32xi32>
      %23 = tpu.iota {dimensions = array<i32: 1>} : vector<32x32xi32>
      %24 = arith.cmpi eq, %22, %23 : vector<32x32xi32>
      %cst_19 = arith.constant 0.000000e+00 : f32
      %25 = vector.broadcast %cst_19 : f32 to vector<32x32xf32>
      %26 = arith.select %24, %21, %25 : vector<32x32xi1>, vector<32x32xf32>
      %cst_20 = arith.constant dense<0.000000e+00> : vector<32xf32>
      %27 = vector.multi_reduction <add>, %26, %cst_20 [0] : vector<32x32xf32> to vector<32xf32>
      %28 = vector.shape_cast %27 : vector<32xf32> to vector<1x32xf32>
      %cst_21 = arith.constant 7.000000e+00 : f32
      %29 = vector.broadcast %cst_21 : f32 to vector<1x32xf32>
      %30 = arith.divf %28, %29 : vector<1x32xf32>
      %31 = math.rsqrt %30 : vector<1x32xf32>
      %cst_22 = arith.constant dense<0.000000e+00> : vector<32x32xf32>
      %32 = tpu.matmul %31, %31, %cst_22 {dimension_numbers = #tpu.dot_dimension_numbers<[0], [0], [1], [1], [0, 1, 1, 1], [], []>} : vector<1x32xf32>, vector<1x32xf32>, vector<32x32xf32> -> vector<32x32xf32>
      %33 = arith.mulf %21, %32 : vector<32x32xf32>
      %cst_23 = arith.constant 1.250000e-01 : f32
      %34 = vector.broadcast %cst_23 : f32 to vector<32x32xf32>
      %35 = arith.mulf %33, %34 : vector<32x32xf32>
      %36 = arith.extui %24 : vector<32x32xi1> to vector<32x32xi32>
      %37 = arith.sitofp %36 : vector<32x32xi32> to vector<32x32xf32>
      %38 = arith.subf %37, %35 : vector<32x32xf32>
      %39 = math.absf %38 : vector<32x32xf32>
      %40 = vector.shape_cast %39 : vector<32x32xf32> to vector<1x32x32xf32>
      %cst_24 = arith.constant dense<0.000000e+00> : vector<1xf32>
      %41 = vector.multi_reduction <add>, %40, %cst_24 [1, 2] : vector<1x32x32xf32> to vector<1xf32>
      %42 = vector.shape_cast %41 : vector<1xf32> to vector<1x1x1xf32>
      %43 = vector.extract %42[0, 0, 0] : f32 from vector<1x1x1xf32>
      %44 = vector.broadcast %43 : f32 to vector<1x1xf32>
      %c0_25 = arith.constant 0 : index
      %c0_26 = arith.constant 0 : index
      %45 = vector.load %arg2[%c0_25, %c0_26] : memref<1x1xf32, #tpu.memory_space<vmem>>, vector<1x1xf32>
      tpu.vector_store %arg2[%c0_25, %c0_26], %44 {strides = array<i32>} : memref<1x1xf32, #tpu.memory_space<vmem>>, vector<1x1xf32>,
    } else {
    }
    return
  }
  func.func @transform_0(%arg0: i32) -> (i32, i32) {
    %c0_i32 = arith.constant 0 : i32
    %c0_i32_0 = arith.constant 0 : i32
    return %arg0, %c0_i32 : i32, i32
  }
  func.func @transform_1(%arg0: i32) -> (i32, i32) {
    %c0_i32 = arith.constant 0 : i32
    %c0_i32_0 = arith.constant 0 : i32
    %c0_i32_1 = arith.constant 0 : i32
    return %c0_i32, %c0_i32_0 : i32, i32
  }
}

</mosaic_0001>

<llo_original>
// kernel: tpu_custom_call.1
$region0: #{tpu_custom_call.1}
  #allocation0 [shape = 'u32[]', space=smem, size = 0x4, offset = 0x4, fixed_abs, tag = 'smem constant byte address 0x4 - core index']
  #allocation1 [shape = 'u32[144,128]{1,0:T(1,128)}', space=vmem, size = 0x12000, scoped, tag = 'internal scratch']
  #allocation2 [shape = 'f32[1,32]{1,0:T(1,128)}', space=vmem, size = 0x200, scoped, tag = 'scratch operand']
  #allocation3 [shape = 'f32[32,32]{1,0:T(8,128)}', space=vmem, size = 0x4000, scoped, tag = 'scratch operand']
  %s0 = inlined_call_operand.hbm [shape: f32[8,32], index: 0, kind: input, shape index: {}]
  %s1 = inlined_call_operand.hbm [shape: f32[1,1], index: 1, kind: output, shape index: {}]
  %s2 = sld [smem:[#allocation0]]
  $region26: #{tpu_custom_call.1} parent=0
    _
  %s4 = ssub.s32 1, %s2
  %s5 = scalar_select 0, %s4, %s2
  $region1: #{tpu_custom_call.1} parent=0
    #allocation4 [shape = 'u8[4096]{0}', space=vmem, size = 0x1000, scoped, tag = 'input window, operand 0, single buffered']
    #allocation5 [shape = 's32[1]{0}', space=sflag, size = 0x4, scoped, tag = 'scoped memory for tpu_custom_call.1']
    #allocation6 [shape = 's32[1]{0}', space=sflag, size = 0x4, scoped, tag = 'scoped memory for tpu_custom_call.1']
    #allocation7 [shape = 'u8[512]{0}', space=vmem, size = 0x400, scoped, tag = 'output window, operand 0, single buffered']
    %6 = vsyncpa [#allocation5], 0
    %7 = vsyncpa [#allocation6], 0
    // Predicated region
    $region2: #{tpu_custom_call.1} parent=1 // pred_check
      _
    $region3: #{tpu_custom_call.1} parent=1 // pred_check_branch
      %9 = sbr.rel (0) target = $region5
    $region4: #{tpu_custom_call.1} parent=1 // pred_region
      %s11 = ssub.s32 128, 128
      %12 = vsyncadd [#allocation5], %s11
      %s14 = sshll.u32 [#allocation4], 4
      %s15 = int_to_ptr.vmem [resolvable:$true] %s14
      %17 = dma.hbm_to_vmem [thread:$0]  %s0, 128, %s15, [#allocation5]
    $region5: #{tpu_custom_call.1} parent=1 // pred_fallthru
      _
    // Predicated region
    $region6: #{tpu_custom_call.1} parent=1 // pred_check
      _
    $region7: #{tpu_custom_call.1} parent=1 // pred_check_branch
      %19 = sbr.rel (0) target = $region9
    $region8: #{tpu_custom_call.1} parent=1 // pred_region
      %20 = dma.done [#allocation5], 128
    $region9: #{tpu_custom_call.1} parent=1 // pred_fallthru
      _
    %p21 = scmp.eq.s32.totalorder 0, 0
    // Predicated region
    $region10: #{tpu_custom_call.1} parent=1 // pred_check
      %p22 = pneg %p21
    $region11: #{tpu_custom_call.1} parent=1 // pred_check_branch
      %24 = sbr.rel (%p22) target = $region13
    $region12: #{tpu_custom_call.1} parent=1 // pred_region
      %vm25 = vcmask 253952
      %26 = vst.msk [vmem:[#allocation2] sm:$0x1] %vm25, 0.0
      %vm27 = vcmask 261120
      %28 = vst.msk [vmem:[#allocation3] sm:$0xff] %vm27, 0.0
      %29 = vst.msk [vmem:[#allocation3 + $0x8] sm:$0xff] %vm27, 0.0
      %30 = vst.msk [vmem:[#allocation3 + $0x10] sm:$0xff] %vm27, 0.0
      %31 = vst.msk [vmem:[#allocation3 + $0x18] sm:$0xff] %vm27, 0.0
    $region13: #{tpu_custom_call.1} parent=1 // pred_fallthru
      _
    %v32 = vld [vmem:[#allocation4] sm:$0xff]
    %v33 = vld [vmem:[#allocation2] sm:$0x1]
    %vm34 = vcmask 261120
    %v35 = vsel %vm34, %v32, 0.0
    %v36 = vrot.slane %v35, 4
    %v37 = vadd.f32 %v35, %v36
    %v38 = vrot.slane %v37, 2
    %v39 = vadd.f32 %v37, %v38
    %v40 = vrot.slane %v39, 1
    %v41 = vadd.f32 %v39, %v40
    %v42 = vadd.f32 %v33, %v41
    %vm43 = vcmask 253952
    %44 = vst.msk [vmem:[#allocation2] sm:$0x1] %vm43, %v42
    %v45 = vld [vmem:[#allocation3] sm:$0xff]
    %v46 = vld [vmem:[#allocation3 + $0x8] sm:$0xff]
    %v47 = vld [vmem:[#allocation3 + $0x10] sm:$0xff]
    %v48 = vld [vmem:[#allocation3 + $0x18] sm:$0xff]
    %49 = vxpose.xlu0.b32.start [1/16] %v32, 128
    %50 = vxpose.xlu0.b32.cont [2/16] 0.0, 128
    %51 = vxpose.xlu0.b32.cont [3/16] 0.0, 128
    %52 = vxpose.xlu0.b32.cont [4/16] 0.0, 128
    %53 = vxpose.xlu0.b32.cont [5/16] 0.0, 128
    %54 = vxpose.xlu0.b32.cont [6/16] 0.0, 128
    %55 = vxpose.xlu0.b32.cont [7/16] 0.0, 128
    %56 = vxpose.xlu0.b32.cont [8/16] 0.0, 128
    %57 = vxpose.xlu0.b32.cont [9/16] 0.0, 128
    %58 = vxpose.xlu0.b32.cont [10/16] 0.0, 128
    %59 = vxpose.xlu0.b32.cont [11/16] 0.0, 128
    %60 = vxpose.xlu0.b32.cont [12/16] 0.0, 128
    %61 = vxpose.xlu0.b32.cont [13/16] 0.0, 128
    %62 = vxpose.xlu0.b32.cont [14/16] 0.0, 128
    %63 = vxpose.xlu0.b32.cont [15/16] 0.0, 128
    %64 = vxpose.xlu0.b32.end [16/16] 0.0, 128
    %v65 = vpop.trf.xlu0
    %v66 = vpop.trf.xlu0
    %v67 = vpop.trf.xlu0
    %v68 = vpop.trf.xlu0
    %v69 = vpop.trf.xlu0
    %v70 = vpop.trf.xlu0
    %v71 = vpop.trf.xlu0
    %v72 = vpop.trf.xlu0
    %v73 = vpop.trf.xlu0
    %v74 = vpop.trf.xlu0
    %v75 = vpop.trf.xlu0
    %v76 = vpop.trf.xlu0
    %v77 = vpop.trf.xlu0
    %v78 = vpop.trf.xlu0
    %v79 = vpop.trf.xlu0
    %v80 = vpop.trf.xlu0
    %vm81 = vcmask 64512
    %v83 = vsel %vm81, %v65, 0
    %v86 = vsel %vm81, %v66, 0
    %v89 = vsel %vm81, %v67, 0
    %v92 = vsel %vm81, %v68, 0
    %94 = vmatprep.subr.mxu0 0.0
    %95 = vmatpush1.msra.mxu0 %v32
    %96 = vmatprep.subr.mxu0 0.0
    %97 = vmatpush1.msra.mxu0 0.0
    %98 = vmatprep.subr.mxu0 0.0
    %99 = vmatpush1.msra.mxu0 0.0
    %100 = vmatprep.subr.mxu0 0.0
    %101 = vmatpush1.msra.mxu0 0.0
    %102 = vmatprep.subr.mxu0 0.0
    %103 = vmatpush1.msra.mxu0 0.0
    %104 = vmatprep.subr.mxu0 0.0
    %105 = vmatpush1.msra.mxu0 0.0
    %106 = vmatprep.subr.mxu0 0.0
    %107 = vmatpush1.msra.mxu0 0.0
    %108 = vmatprep.subr.mxu0 0.0
    %109 = vmatpush1.msra.mxu0 0.0
    %110 = vmatprep.subr.mxu0 0.0
    %111 = vmatpush1.msra.mxu0 0.0
    %112 = vmatprep.subr.mxu0 0.0
    %113 = vmatpush1.msra.mxu0 0.0
    %114 = vmatprep.subr.mxu0 0.0
    %115 = vmatpush1.msra.mxu0 0.0
    %116 = vmatprep.subr.mxu0 0.0
    %117 = vmatpush1.msra.mxu0 0.0
    %118 = vmatprep.subr.mxu0 0.0
    %119 = vmatpush1.msra.mxu0 0.0
    %120 = vmatprep.subr.mxu0 0.0
    %121 = vmatpush1.msra.mxu0 0.0
    %122 = vmatprep.subr.mxu0 0.0
    %123 = vmatpush1.msra.mxu0 0.0
    %124 = vmatprep.subr.mxu0 0.0
    %125 = vmatpush1.msra.mxu0 0.0
    %126 = vmatprep.subr.mxu0 0.0
    %127 = vmatpush1.msra.mxu0 0.0
    %128 = vmatprep.subr.mxu0 0.0
    %129 = vmatpush1.msra.mxu0 0.0
    %130 = vmatprep.subr.mxu0 0.0
    %131 = vmatpush1.msra.mxu0 0.0
    %132 = vmatprep.subr.mxu0 0.0
    %133 = vmatpush1.msra.mxu0 0.0
    %134 = vmatprep.subr.mxu0 0.0
    %135 = vmatpush1.msra.mxu0 0.0
    %136 = vmatprep.subr.mxu0 0.0
    %137 = vmatpush1.msra.mxu0 0.0
    %138 = vmatprep.subr.mxu0 0.0
    %139 = vmatpush1.msra.mxu0 0.0
    %140 = vmatprep.subr.mxu0 0.0
    %141 = vmatpush1.msra.mxu0 0.0
    %142 = vmatprep.subr.mxu0 0.0
    %143 = vmatpush1.msra.mxu0 0.0
    %144 = vmatprep.subr.mxu0 0.0
    %145 = vmatpush1.msra.mxu0 0.0
    %146 = vmatprep.subr.mxu0 0.0
    %147 = vmatpush1.msra.mxu0 0.0
    %148 = vmatprep.subr.mxu0 0.0
    %149 = vmatpush1.msra.mxu0 0.0
    %150 = vmatprep.subr.mxu0 0.0
    %151 = vmatpush1.msra.mxu0 0.0
    %152 = vmatprep.subr.mxu0 0.0
    %153 = vmatpush1.msra.mxu0 0.0
    %154 = vmatprep.subr.mxu0 0.0
    %155 = vmatpush1.msra.mxu0 0.0
    %156 = vmatprep.subr.mxu0 0.0
    %157 = vmatpush1.msra.mxu0 0.0
    %158 = vmatprep.mubr.f32.mxu0 0.0
    %159 = vmatmul.mubr.f32.gmra.mrb[0].mxu0 %v83
    %v160 = vpop.f32.mrb[0].mxu0
    %v161 = vadd.f32 0.0, %v160
    %v162 = vpop.f32.mrb[0].mxu0
    %163 = vmatprep.mubr.f32.mxu0 0.0
    %164 = vmatmul.mubr.f32.gmra.mrb[0].mxu0 %v86
    %v165 = vpop.f32.mrb[0].mxu0
    %v166 = vadd.f32 0.0, %v165
    %v167 = vpop.f32.mrb[0].mxu0
    %168 = vmatprep.mubr.f32.mxu0 0.0
    %169 = vmatmul.mubr.f32.gmra.mrb[0].mxu0 %v89
    %v170 = vpop.f32.mrb[0].mxu0
    %v171 = vadd.f32 0.0, %v170
    %v172 = vpop.f32.mrb[0].mxu0
    %173 = vmatprep.mubr.f32.mxu0 0.0
    %174 = vmatmul.mubr.f32.gmra.mrb[0].mxu0 %v92
    %v175 = vpop.f32.mrb[0].mxu0
    %v176 = vadd.f32 0.0, %v175
    %v177 = vpop.f32.mrb[0].mxu0
    %178 = vdwg.mxu0
    %v179 = vadd.f32 %v45, %v161
    %v180 = vadd.f32 %v46, %v166
    %v181 = vadd.f32 %v47, %v171
    %v182 = vadd.f32 %v48, %v176
    %183 = vst.msk [vmem:[#allocation3] sm:$0xff] %vm34, %v179
    %184 = vst.msk [vmem:[#allocation3 + $0x8] sm:$0xff] %vm34, %v180
    %185 = vst.msk [vmem:[#allocation3 + $0x10] sm:$0xff] %vm34, %v181
    %186 = vst.msk [vmem:[#allocation3 + $0x18] sm:$0xff] %vm34, %v182
    // Predicated region
    $region14: #{tpu_custom_call.1} parent=1 // pred_check
      %p187 = pneg %p21
    $region15: #{tpu_custom_call.1} parent=1 // pred_check_branch
      %189 = sbr.rel (%p187) target = $region17
    $region16: #{tpu_custom_call.1} parent=1 // pred_region
      %v190 = vld [vmem:[#allocation2] sm:$0x1]
      %v191 = vld [vmem:[#allocation3] sm:$0xff]
      %v192 = vld [vmem:[#allocation3 + $0x8] sm:$0xff]
      %v193 = vld [vmem:[#allocation3 + $0x10] sm:$0xff]
      %v194 = vld [vmem:[#allocation3 + $0x18] sm:$0xff]
      %195 = vxpose.xlu0.b32.start [1/16] %v190, 128
      %196 = vxpose.xlu0.b32.cont [2/16] 0.0, 128
      %197 = vxpose.xlu0.b32.cont [3/16] 0.0, 128
      %198 = vxpose.xlu0.b32.cont [4/16] 0.0, 128
      %199 = vxpose.xlu0.b32.cont [5/16] 0.0, 128
      %200 = vxpose.xlu0.b32.cont [6/16] 0.0, 128
      %201 = vxpose.xlu0.b32.cont [7/16] 0.0, 128
      %202 = vxpose.xlu0.b32.cont [8/16] 0.0, 128
      %203 = vxpose.xlu0.b32.cont [9/16] 0.0, 128
      %204 = vxpose.xlu0.b32.cont [10/16] 0.0, 128
      %205 = vxpose.xlu0.b32.cont [11/16] 0.0, 128
      %206 = vxpose.xlu0.b32.cont [12/16] 0.0, 128
      %207 = vxpose.xlu0.b32.cont [13/16] 0.0, 128
      %208 = vxpose.xlu0.b32.cont [14/16] 0.0, 128
      %209 = vxpose.xlu0.b32.cont [15/16] 0.0, 128
      %210 = vxpose.xlu0.b32.end [16/16] 0.0, 128
      %v211 = vpop.trf.xlu0
      %v212 = vpop.trf.xlu0
      %v213 = vpop.trf.xlu0
      %v214 = vpop.trf.xlu0
      %v215 = vpop.trf.xlu0
      %v216 = vpop.trf.xlu0
      %v217 = vpop.trf.xlu0
      %v218 = vpop.trf.xlu0
      %v219 = vpop.trf.xlu0
      %v220 = vpop.trf.xlu0
      %v221 = vpop.trf.xlu0
      %v222 = vpop.trf.xlu0
      %v223 = vpop.trf.xlu0
      %v224 = vpop.trf.xlu0
      %v225 = vpop.trf.xlu0
      %v226 = vpop.trf.xlu0
      %vm227 = vcmask 7168
      %v229 = vsel %vm227, %v211, 0
      %v232 = vsel %vm227, %v212, 0
      %v235 = vsel %vm227, %v213, 0
      %v238 = vsel %vm227, %v214, 0
      %vm240 = vcmask 1040384
      %v242 = vsel %vm240, %v190, 0
      %244 = vmatprep.subr.mxu0 0.0
      %245 = vmatpush1.msra.mxu0 %v242
      %246 = vmatprep.subr.mxu0 0.0
      %247 = vmatpush1.msra.mxu0 0.0
      %248 = vmatprep.subr.mxu0 0.0
      %249 = vmatpush1.msra.mxu0 0.0
      %250 = vmatprep.subr.mxu0 0.0
      %251 = vmatpush1.msra.mxu0 0.0
      %252 = vmatprep.subr.mxu0 0.0
      %253 = vmatpush1.msra.mxu0 0.0
      %254 = vmatprep.subr.mxu0 0.0
      %255 = vmatpush1.msra.mxu0 0.0
      %256 = vmatprep.subr.mxu0 0.0
      %257 = vmatpush1.msra.mxu0 0.0
      %258 = vmatprep.subr.mxu0 0.0
      %259 = vmatpush1.msra.mxu0 0.0
      %260 = vmatprep.subr.mxu0 0.0
      %261 = vmatpush1.msra.mxu0 0.0
      %262 = vmatprep.subr.mxu0 0.0
      %263 = vmatpush1.msra.mxu0 0.0
      %264 = vmatprep.subr.mxu0 0.0
      %265 = vmatpush1.msra.mxu0 0.0
      %266 = vmatprep.subr.mxu0 0.0
      %267 = vmatpush1.msra.mxu0 0.0
      %268 = vmatprep.subr.mxu0 0.0
      %269 = vmatpush1.msra.mxu0 0.0
      %270 = vmatprep.subr.mxu0 0.0
      %271 = vmatpush1.msra.mxu0 0.0
      %272 = vmatprep.subr.mxu0 0.0
      %273 = vmatpush1.msra.mxu0 0.0
      %274 = vmatprep.subr.mxu0 0.0
      %275 = vmatpush1.msra.mxu0 0.0
      %276 = vmatprep.subr.mxu0 0.0
      %277 = vmatpush1.msra.mxu0 0.0
      %278 = vmatprep.subr.mxu0 0.0
      %279 = vmatpush1.msra.mxu0 0.0
      %280 = vmatprep.subr.mxu0 0.0
      %281 = vmatpush1.msra.mxu0 0.0
      %282 = vmatprep.subr.mxu0 0.0
      %283 = vmatpush1.msra.mxu0 0.0
      %284 = vmatprep.subr.mxu0 0.0
      %285 = vmatpush1.msra.mxu0 0.0
      %286 = vmatprep.subr.mxu0 0.0
      %287 = vmatpush1.msra.mxu0 0.0
      %288 = vmatprep.subr.mxu0 0.0
      %289 = vmatpush1.msra.mxu0 0.0
      %290 = vmatprep.subr.mxu0 0.0
      %291 = vmatpush1.msra.mxu0 0.0
      %292 = vmatprep.subr.mxu0 0.0
      %293 = vmatpush1.msra.mxu0 0.0
      %294 = vmatprep.subr.mxu0 0.0
      %295 = vmatpush1.msra.mxu0 0.0
      %296 = vmatprep.subr.mxu0 0.0
      %297 = vmatpush1.msra.mxu0 0.0
      %298 = vmatprep.subr.mxu0 0.0
      %299 = vmatpush1.msra.mxu0 0.0
      %300 = vmatprep.subr.mxu0 0.0
      %301 = vmatpush1.msra.mxu0 0.0
      %302 = vmatprep.subr.mxu0 0.0
      %303 = vmatpush1.msra.mxu0 0.0
      %304 = vmatprep.subr.mxu0 0.0
      %305 = vmatpush1.msra.mxu0 0.0
      %306 = vmatprep.subr.mxu0 0.0
      %307 = vmatpush1.msra.mxu0 0.0
      %308 = vmatprep.mubr.f32.mxu0 0.0
      %309 = vmatmul.mubr.f32.gmra.mrb[0].mxu0 %v229
      %v310 = vpop.f32.mrb[0].mxu0
      %v311 = vadd.f32 0.0, %v310
      %v312 = vpop.f32.mrb[0].mxu0
      %313 = vmatprep.mubr.f32.mxu0 0.0
      %314 = vmatmul.mubr.f32.gmra.mrb[0].mxu0 %v232
      %v315 = vpop.f32.mrb[0].mxu0
      %v316 = vadd.f32 0.0, %v315
      %v317 = vpop.f32.mrb[0].mxu0
      %318 = vmatprep.mubr.f32.mxu0 0.0
      %319 = vmatmul.mubr.f32.gmra.mrb[0].mxu0 %v235
      %v320 = vpop.f32.mrb[0].mxu0
      %v321 = vadd.f32 0.0, %v320
      %v322 = vpop.f32.mrb[0].mxu0
      %323 = vmatprep.mubr.f32.mxu0 0.0
      %324 = vmatmul.mubr.f32.gmra.mrb[0].mxu0 %v238
      %v325 = vpop.f32.mrb[0].mxu0
      %v326 = vadd.f32 0.0, %v325
      %v327 = vpop.f32.mrb[0].mxu0
      %328 = vdwg.mxu0
      %v329 = vmul.f32 %v311, 0.125
      %v330 = vmul.f32 %v316, 0.125
      %v331 = vmul.f32 %v321, 0.125
      %v332 = vmul.f32 %v326, 0.125
      %v333 = vsub.f32 %v191, %v329
      %v334 = vsub.f32 %v192, %v330
      %v335 = vsub.f32 %v193, %v331
      %v336 = vsub.f32 %v194, %v332
      %v337 = vlaneseq
      %v338 = vshrl.u32 %v337, 7
      %v339 = vadd.s32 %v338, 8
      %v340 = vadd.s32 %v338, 16
      %v341 = vadd.s32 %v338, 24
      %v342 = vlaneseq
      %v343 = vand.u32 %v342, 127
      %vm344 = vcmp.eq.s32.totalorder %v338, %v343
      %vm345 = vcmp.eq.s32.totalorder %v339, %v343
      %vm346 = vcmp.eq.s32.totalorder %v340, %v343
      %vm347 = vcmp.eq.s32.totalorder %v341, %v343
      %v348 = vsel %vm344, %v333, 0.0
      %v349 = vsel %vm345, %v334, 0.0
      %v350 = vsel %vm346, %v335, 0.0
      %v351 = vsel %vm347, %v336, 0.0
      %v352 = vsel %vm34, %v348, 0.0
      %v353 = vsel %vm34, %v349, 0.0
      %v354 = vadd.f32 %v352, %v353
      %v355 = vsel %vm34, %v350, 0.0
      %v356 = vadd.f32 %v354, %v355
      %v357 = vsel %vm34, %v351, 0.0
      %v358 = vadd.f32 %v356, %v357
      %v359 = vrot.slane %v358, 4
      %v360 = vadd.f32 %v358, %v359
      %v361 = vrot.slane %v360, 2
      %v362 = vadd.f32 %v360, %v361
      %v363 = vrot.slane %v362, 1
      %v364 = vadd.f32 %v362, %v363
      %v365 = vrcp.pop 7.0
      %v366 = vmul.f32 %v364, %v365
      %v367 = vrsqrt.pop %v366
      %368 = vxpose.xlu0.b32.start [1/16] %v367, 128
      %369 = vxpose.xlu0.b32.cont [2/16] 0.0, 128
      %370 = vxpose.xlu0.b32.cont [3/16] 0.0, 128
      %371 = vxpose.xlu0.b32.cont [4/16] 0.0, 128
      %372 = vxpose.xlu0.b32.cont [5/16] 0.0, 128
      %373 = vxpose.xlu0.b32.cont [6/16] 0.0, 128
      %374 = vxpose.xlu0.b32.cont [7/16] 0.0, 128
      %375 = vxpose.xlu0.b32.cont [8/16] 0.0, 128
      %376 = vxpose.xlu0.b32.cont [9/16] 0.0, 128
      %377 = vxpose.xlu0.b32.cont [10/16] 0.0, 128
      %378 = vxpose.xlu0.b32.cont [11/16] 0.0, 128
      %379 = vxpose.xlu0.b32.cont [12/16] 0.0, 128
      %380 = vxpose.xlu0.b32.cont [13/16] 0.0, 128
      %381 = vxpose.xlu0.b32.cont [14/16] 0.0, 128
      %382 = vxpose.xlu0.b32.cont [15/16] 0.0, 128
      %383 = vxpose.xlu0.b32.end [16/16] 0.0, 128
      %v384 = vpop.trf.xlu0
      %v385 = vpop.trf.xlu0
      %v386 = vpop.trf.xlu0
      %v387 = vpop.trf.xlu0
      %v388 = vpop.trf.xlu0
      %v389 = vpop.trf.xlu0
      %v390 = vpop.trf.xlu0
      %v391 = vpop.trf.xlu0
      %v392 = vpop.trf.xlu0
      %v393 = vpop.trf.xlu0
      %v394 = vpop.trf.xlu0
      %v395 = vpop.trf.xlu0
      %v396 = vpop.trf.xlu0
      %v397 = vpop.trf.xlu0
      %v398 = vpop.trf.xlu0
      %v399 = vpop.trf.xlu0
      %v401 = vsel %vm227, %v384, 0
      %v404 = vsel %vm227, %v385, 0
      %v407 = vsel %vm227, %v386, 0
      %v410 = vsel %vm227, %v387, 0
      %v413 = vsel %vm240, %v367, 0
      %415 = vmatprep.subr.mxu0 0.0
      %416 = vmatpush1.msra.mxu0 %v413
      %417 = vmatprep.subr.mxu0 0.0
      %418 = vmatpush1.msra.mxu0 0.0
      %419 = vmatprep.subr.mxu0 0.0
      %420 = vmatpush1.msra.mxu0 0.0
      %421 = vmatprep.subr.mxu0 0.0
      %422 = vmatpush1.msra.mxu0 0.0
      %423 = vmatprep.subr.mxu0 0.0
      %424 = vmatpush1.msra.mxu0 0.0
      %425 = vmatprep.subr.mxu0 0.0
      %426 = vmatpush1.msra.mxu0 0.0
      %427 = vmatprep.subr.mxu0 0.0
      %428 = vmatpush1.msra.mxu0 0.0
      %429 = vmatprep.subr.mxu0 0.0
      %430 = vmatpush1.msra.mxu0 0.0
      %431 = vmatprep.subr.mxu0 0.0
      %432 = vmatpush1.msra.mxu0 0.0
      %433 = vmatprep.subr.mxu0 0.0
      %434 = vmatpush1.msra.mxu0 0.0
      %435 = vmatprep.subr.mxu0 0.0
      %436 = vmatpush1.msra.mxu0 0.0
      %437 = vmatprep.subr.mxu0 0.0
      %438 = vmatpush1.msra.mxu0 0.0
      %439 = vmatprep.subr.mxu0 0.0
      %440 = vmatpush1.msra.mxu0 0.0
      %441 = vmatprep.subr.mxu0 0.0
      %442 = vmatpush1.msra.mxu0 0.0
      %443 = vmatprep.subr.mxu0 0.0
      %444 = vmatpush1.msra.mxu0 0.0
      %445 = vmatprep.subr.mxu0 0.0
      %446 = vmatpush1.msra.mxu0 0.0
      %447 = vmatprep.subr.mxu0 0.0
      %448 = vmatpush1.msra.mxu0 0.0
      %449 = vmatprep.subr.mxu0 0.0
      %450 = vmatpush1.msra.mxu0 0.0
      %451 = vmatprep.subr.mxu0 0.0
      %452 = vmatpush1.msra.mxu0 0.0
      %453 = vmatprep.subr.mxu0 0.0
      %454 = vmatpush1.msra.mxu0 0.0
      %455 = vmatprep.subr.mxu0 0.0
      %456 = vmatpush1.msra.mxu0 0.0
      %457 = vmatprep.subr.mxu0 0.0
      %458 = vmatpush1.msra.mxu0 0.0
      %459 = vmatprep.subr.mxu0 0.0
      %460 = vmatpush1.msra.mxu0 0.0
      %461 = vmatprep.subr.mxu0 0.0
      %462 = vmatpush1.msra.mxu0 0.0
      %463 = vmatprep.subr.mxu0 0.0
      %464 = vmatpush1.msra.mxu0 0.0
      %465 = vmatprep.subr.mxu0 0.0
      %466 = vmatpush1.msra.mxu0 0.0
      %467 = vmatprep.subr.mxu0 0.0
      %468 = vmatpush1.msra.mxu0 0.0
      %469 = vmatprep.subr.mxu0 0.0
      %470 = vmatpush1.msra.mxu0 0.0
      %471 = vmatprep.subr.mxu0 0.0
      %472 = vmatpush1.msra.mxu0 0.0
      %473 = vmatprep.subr.mxu0 0.0
      %474 = vmatpush1.msra.mxu0 0.0
      %475 = vmatprep.subr.mxu0 0.0
      %476 = vmatpush1.msra.mxu0 0.0
      %477 = vmatprep.subr.mxu0 0.0
      %478 = vmatpush1.msra.mxu0 0.0
      %479 = vmatprep.mubr.f32.mxu0 0.0
      %480 = vmatmul.mubr.f32.gmra.mrb[0].mxu0 %v401
      %v481 = vpop.f32.mrb[0].mxu0
      %v482 = vadd.f32 0.0, %v481
      %v483 = vpop.f32.mrb[0].mxu0
      %484 = vmatprep.mubr.f32.mxu0 0.0
      %485 = vmatmul.mubr.f32.gmra.mrb[0].mxu0 %v404
      %v486 = vpop.f32.mrb[0].mxu0
      %v487 = vadd.f32 0.0, %v486
      %v488 = vpop.f32.mrb[0].mxu0
      %489 = vmatprep.mubr.f32.mxu0 0.0
      %490 = vmatmul.mubr.f32.gmra.mrb[0].mxu0 %v407
      %v491 = vpop.f32.mrb[0].mxu0
      %v492 = vadd.f32 0.0, %v491
      %v493 = vpop.f32.mrb[0].mxu0
      %494 = vmatprep.mubr.f32.mxu0 0.0
      %495 = vmatmul.mubr.f32.gmra.mrb[0].mxu0 %v410
      %v496 = vpop.f32.mrb[0].mxu0
      %v497 = vadd.f32 0.0, %v496
      %v498 = vpop.f32.mrb[0].mxu0
      %499 = vdwg.mxu0
      %v500 = vmul.f32 %v333, %v482
      %v501 = vmul.f32 %v334, %v487
      %v502 = vmul.f32 %v335, %v492
      %v503 = vmul.f32 %v336, %v497
      %v504 = vmul.f32 %v500, 0.125
      %v505 = vmul.f32 %v501, 0.125
      %v506 = vmul.f32 %v502, 0.125
      %v507 = vmul.f32 %v503, 0.125
      %v508 = vsel %vm344, 1, 0
      %v509 = vsel %vm345, 1, 0
      %v510 = vsel %vm346, 1, 0
      %v511 = vsel %vm347, 1, 0
      %v512 = vcvt.s32.f32 %v508
      %v513 = vcvt.s32.f32 %v509
      %v514 = vcvt.s32.f32 %v510
      %v515 = vcvt.s32.f32 %v511
      %v516 = vsub.f32 %v512, %v504
      %v517 = vsub.f32 %v513, %v505
      %v518 = vsub.f32 %v514, %v506
      %v519 = vsub.f32 %v515, %v507
      %v520 = vand.u32 2147483647, %v516
      %v521 = vand.u32 2147483647, %v517
      %v522 = vand.u32 2147483647, %v518
      %v523 = vand.u32 2147483647, %v519
      %v524 = vsel %vm34, %v520, 0.0
      %v525 = vsel %vm34, %v521, 0.0
      %v526 = vadd.f32 %v524, %v525
      %v527 = vsel %vm34, %v522, 0.0
      %v528 = vadd.f32 %v526, %v527
      %v529 = vsel %vm34, %v523, 0.0
      %v530 = vadd.f32 %v528, %v529
      %531 = vadd.xlane.f32.xlu0 %v530
      %v532 = vpop.xlane.xlu0 %531
      %v533 = vrot.slane %v532, 4
      %v534 = vadd.f32 %v532, %v533
      %v535 = vrot.slane %v534, 2
      %v536 = vadd.f32 %v534, %v535
      %v537 = vrot.slane %v536, 1
      %v538 = vadd.f32 %v536, %v537
      %s539 = vtos %v538
      %v540 = vstv %s539
      %vm541 = vcmask 0
      %542 = vst.msk [vmem:[#allocation7] sm:$0x1] %vm541, %v540
    $region17: #{tpu_custom_call.1} parent=1 // pred_fallthru
      _
    // Predicated region
    $region18: #{tpu_custom_call.1} parent=1 // pred_check
      _
    $region19: #{tpu_custom_call.1} parent=1 // pred_check_branch
      %544 = sbr.rel (0) target = $region21
    $region20: #{tpu_custom_call.1} parent=1 // pred_region
      %s546 = ssub.s32 16, 16
      %547 = vsyncadd [#allocation6], %s546
      %s549 = sshll.u32 [#allocation7], 4
      %s550 = int_to_ptr.vmem [resolvable:$true] %s549
      %552 = dma.vmem_to_hbm [thread:$0]  %s550, 16, %s1, [#allocation6]
    $region21: #{tpu_custom_call.1} parent=1 // pred_fallthru
      _
    // Predicated region
    $region22: #{tpu_custom_call.1} parent=1 // pred_check
      _
    $region23: #{tpu_custom_call.1} parent=1 // pred_check_branch
      %554 = sbr.rel (0) target = $region25
    $region24: #{tpu_custom_call.1} parent=1 // pred_region
      %555 = dma.done [#allocation6], 16
    $region25: #{tpu_custom_call.1} parent=1 // pred_fallthru
      _
    %556 = vsyncpa [#allocation5], 1
    %557 = vsyncpa [#allocation6], 1

</llo_original>
